<compile_context>
chip_gen: v7x
topology: tpu7x:2x2x1
jax: 0.10.0
libtpu: 0.0.40
codegen_flags: <defaults>
</compile_context>

<pallas_src>
import functools
import math

import jax
import jax.numpy as jnp
from jax import lax
from jax.experimental import pallas as pl
from jax.experimental.pallas import tpu as pltpu


def _cdiv(a, b):
    return -(-a // b)


def _round_up(a, b):
    return _cdiv(a, b) * b


def _vmem_budgets():
    """(per-block VMEM budget, vmem_limit_bytes), derived from the chip."""
    try:
        cap = int(pltpu.get_tpu_info().vmem_capacity_bytes)
    except Exception:                      # unknown chip — be v7x-conservative
        cap = 64 << 20
    budget = max(6 << 20, min(24 << 20, cap // 5))     # v7x ~12.8MiB, v5e/v6e 24MiB
    limit = max(32 << 20, min(64 << 20, cap // 2))     # v7x 32MiB,   v5e/v6e 64MiB
    return budget, limit


def _plan_rows(b_total, row_bytes_dbuf, budget, unit, max_rows):
    """Balanced sublane tiling: (block_rows, grid_steps), waste < unit/step."""
    cap = max(unit, min(max_rows, (budget // max(row_bytes_dbuf, 1)) // unit * unit))
    if b_total <= cap:
        return b_total, 1                  # single block == full dim (always legal)
    steps = _cdiv(b_total, cap)
    tb = _round_up(_cdiv(b_total, steps), unit)
    return tb, _cdiv(b_total, tb)


# ------------------------------ max-pool path ------------------------------ #
def _shifted(a, d, size):
    # result[..., i] = a[..., i + d]; wrap-around only lands on lane positions
    # that are never read for valid output positions.
    if d == 0:
        return a
    return pltpu.roll(a, (size - d) % size, axis=a.ndim - 1)


def _window_max(a, k, stride, size):
    # Sliding-window max of length k (window advances `stride` lanes per tap):
    # O(log2 k) maxes via doubling, then one combine of two overlapping halves.
    m, length = a, 1
    while 2 * length <= k:
        m = jnp.maximum(m, _shifted(m, length * stride, size))
        length *= 2
    if length < k:
        m = jnp.maximum(m, _shifted(m, (k - length) * stride, size))
    return m


def _maxpool_kernel(s_ref, x_ref, o_ref, *, k, W, ts):
    # s_ref: (HWl, OHW) 0/1 gather matrix (fetched once; constant index map)
    # x_ref: (tb, HWl)  planes on sublanes, flattened H*W image on lanes
    # o_ref: (tb, OHW)
    tb, hwl = x_ref.shape
    sel = s_ref[...]                                     # hoisted out of the loop
    for r0 in range(0, tb, ts):                          # small live working set
        rows = min(ts, tb - r0)
        m = x_ref[pl.ds(r0, rows), :]
        m = _window_max(m, k, W, hwl)                    # window rows  (stride W)
        m = _window_max(m, k, 1, hwl)                    # window cols  (stride 1)
        o_ref[pl.ds(r0, rows), :] = jnp.dot(
            m.astype(sel.dtype), sel,
            preferred_element_type=jnp.float32).astype(o_ref.dtype)


def _selection_matrix(W, oh, ow, hwl):
    """S[h*W + w, h*ow + w] = 1 for h < oh, w < ow (valid window positions)."""
    src = (jnp.arange(oh)[:, None] * W + jnp.arange(ow)[None, :]).reshape(-1)
    s = jnp.zeros((hwl, oh * ow), jnp.float32)
    return s.at[src, jnp.arange(oh * ow)].set(1.0)


def _plan_maxpool(B, hwl, ohw, itemsize, budget):
    # sub-chunk rows: keep the doubling accumulator around ~128 KiB (vregs)
    ts = max(8, min(512, ((128 << 10) // (hwl * itemsize)) // 8 * 8))
    ts = min(ts, _round_up(B, 8))
    row_bytes = 2 * (hwl + ohw) * itemsize               # double-buffered in+out
    tb, steps = _plan_rows(B, row_bytes, budget, ts, 16 * ts)
    return tb, steps, ts


# ------------------------------ bilinear path ------------------------------ #
def _bilinear_kernel(w_ref, x_ref, o_ref):
    # o = x @ kron(Wh, Ww)^T :  (tb, HW) @ (HW, OHW) -> (tb, OHW)
    o_ref[...] = jnp.dot(x_ref[...].astype(w_ref.dtype), w_ref[...],
                         preferred_element_type=jnp.float32).astype(o_ref.dtype)


def _bilinear_matrix(out_size, in_size):
    """W s.t. y = W @ x matches F.interpolate(..., align_corners=True)."""
    if in_size == 1 or out_size == 1:
        w = jnp.zeros((out_size, in_size), jnp.float32)
        return w.at[:, 0].set(1.0)
    o = jnp.arange(out_size, dtype=jnp.float32)
    coord = o * (in_size - 1) / (out_size - 1)
    lo = jnp.clip(jnp.floor(coord).astype(jnp.int32), 0, in_size - 2)
    frac = coord - lo.astype(jnp.float32)
    w = jnp.zeros((out_size, in_size), jnp.float32)
    rows = jnp.arange(out_size)
    w = w.at[rows, lo].add(1.0 - frac)
    w = w.at[rows, lo + 1].add(frac)
    return w


# --------------------------------- wrapper --------------------------------- #
def patch_slicing(x, grid_size=8):
    N, C, H, W = x.shape
    if H == grid_size:
        return x

    B = N * C
    HW = H * W
    itemsize = jnp.dtype(x.dtype).itemsize
    wdtype = jnp.bfloat16 if x.dtype == jnp.bfloat16 else jnp.float32
    budget, vmem_limit = _vmem_budgets()
    cparams = pltpu.CompilerParams(dimension_semantics=("parallel",),
                                   vmem_limit_bytes=vmem_limit)

    x2 = x.reshape(B, HW)                 # free reshape: planes x flat image

    if H > grid_size:
        k = H - grid_size + 1
        oh, ow = H - k + 1, W - k + 1
        ohw = oh * ow
        # lane rolls want a 128-multiple lane dim; pad only if needed (rare —
        # 16x16 / 32x32 etc. need no padding), padded lanes never contaminate
        # valid outputs (they are beyond every window for valid positions).
        hwl = _round_up(HW, 128)
        if hwl != HW:
            x2 = jnp.pad(x2, ((0, 0), (0, hwl - HW)))
        sel = _selection_matrix(W, oh, ow, hwl).astype(wdtype)
        tb, steps, ts = _plan_maxpool(B, hwl, ohw, itemsize, budget)
        out = pl.pallas_call(
            functools.partial(_maxpool_kernel, k=k, W=W, ts=ts),
            out_shape=jax.ShapeDtypeStruct((B, ohw), x.dtype),
            grid=(steps,),
            in_specs=[pl.BlockSpec((hwl, ohw), lambda i: (0, 0)),   # gather matrix
                      pl.BlockSpec((tb, hwl), lambda i: (i, 0))],
            out_specs=pl.BlockSpec((tb, ohw), lambda i: (i, 0)),
            compiler_params=cparams,
        )(sel, x2)
        return out.reshape(N, C, oh, ow)

    # H < grid_size : bilinear upsample, scale = grid_size / H, align_corners
    scale = grid_size / H
    oh, ow = int(math.floor(H * scale)), int(math.floor(W * scale))
    ohw = oh * ow
    wh = _bilinear_matrix(oh, H)
    ww = _bilinear_matrix(ow, W)
    wkT = jnp.kron(wh, ww).T.astype(wdtype)              # (HW, OHW)
    row_bytes = 2 * (HW + ohw) * itemsize
    tb, steps = _plan_rows(B, row_bytes, budget, 8, 8192)
    out = pl.pallas_call(
        _bilinear_kernel,
        out_shape=jax.ShapeDtypeStruct((B, ohw), x.dtype),
        grid=(steps,),
        in_specs=[pl.BlockSpec((HW, ohw), lambda i: (0, 0)),        # weights
                  pl.BlockSpec((tb, HW), lambda i: (i, 0))],
        out_specs=pl.BlockSpec((tb, ohw), lambda i: (i, 0)),
        compiler_params=cparams,
    )(wkT, x2)
    return out.reshape(N, C, oh, ow)


# -------------------------------- references -------------------------------- #
def _maxpool_ref(x, k):
    return lax.reduce_window(
        x, -jnp.inf, lax.max,
        window_dimensions=(1, 1, k, k),
        window_strides=(1, 1, 1, 1),
        padding="VALID")


def _bilinear_ref(x, oh, ow):
    _, _, H, W = x.shape
    wh = _bilinear_matrix(oh, H)
    ww = _bilinear_matrix(ow, W)
    return jnp.einsum("ph,nchw,qw->ncpq", wh, x.astype(jnp.float32), ww)


# ----------------------------------- main ----------------------------------- #
if __name__ == "__main__":
    key = jax.random.PRNGKey(0)
    k1, k2, k3, k4 = jax.random.split(key, 4)

    # Case 1: H > grid_size -> max_pool2d path (16x16 -> 8x8, k=9)
    x_big = jax.random.normal(k1, (2, 4, 16, 16), dtype=jnp.float32)
    y_big = jax.block_until_ready(patch_slicing(x_big, grid_size=8))
    ref_big = _maxpool_ref(x_big, 16 - 8 + 1)
    assert y_big.shape == (2, 4, 8, 8), y_big.shape
    assert jnp.allclose(y_big, ref_big, atol=1e-5), "maxpool mismatch"

    # Case 1b: larger N*C exercises sublane tiling + in-kernel sub-chunking
    x_wide = jax.random.normal(k3, (8, 32, 16, 16), dtype=jnp.float32)
    y_wide = jax.block_until_ready(patch_slicing(x_wide, grid_size=8))
    ref_wide = _maxpool_ref(x_wide, 16 - 8 + 1)
    assert y_wide.shape == (8, 32, 8, 8), y_wide.shape
    assert jnp.allclose(y_wide, ref_wide, atol=1e-5), "tiled maxpool mismatch"

    # Case 2: H < grid_size -> bilinear (align_corners=True) path (4x4 -> 8x8)
    x_small = jax.random.normal(k2, (2, 4, 4, 4), dtype=jnp.float32)
    y_small = jax.block_until_ready(patch_slicing(x_small, grid_size=8))
    ref_small = _bilinear_ref(x_small, 8, 8)
    assert y_small.shape == (2, 4, 8, 8), y_small.shape
    assert jnp.allclose(y_small, ref_small, atol=1e-5), "bilinear mismatch"

    # Case 2b: bf16 path — weights cast to bf16, no in-kernel upcast
    x_bf16 = jax.random.normal(k4, (2, 4, 4, 4), dtype=jnp.bfloat16)
    y_bf16 = jax.block_until_ready(patch_slicing(x_bf16, grid_size=8))
    ref_bf16 = _bilinear_ref(x_bf16.astype(jnp.float32), 8, 8)
    assert y_bf16.dtype == jnp.bfloat16
    assert jnp.allclose(y_bf16.astype(jnp.float32), ref_bf16, atol=5e-2), \
        "bf16 bilinear mismatch"

    # Case 3: H == grid_size -> identity (no kernel)
    x_eq = jax.random.normal(key, (2, 4, 8, 8), dtype=jnp.float32)
    y_eq = jax.block_until_ready(patch_slicing(x_eq, grid_size=8))
    assert jnp.array_equal(y_eq, x_eq)

    print("KERNEL_OK")
</pallas_src>

<mosaic_0001>
module attributes {stable_mosaic.version = 11 : i64} {
  func.func @_maxpool_kernel(%arg0: i32, %arg1: memref<256x64xf32, #tpu.memory_space<vmem>>, %arg2: memref<8x256xf32, #tpu.memory_space<vmem>>, %arg3: memref<8x64xf32, #tpu.memory_space<vmem>>) attributes {dimension_semantics = [#tpu.dimension_semantics<parallel>], iteration_bounds = array<i64: 1>, scalar_prefetch = 0 : i64, scratch_operands = 0 : i64, tpu.core_type = #tpu.core_type<tc>, window_params = [{pipeline_mode = #tpu.pipeline_mode<synchronous>, transform_indices = @transform_0, window_bounds = array<i64: 256, 64>}, {transform_indices = @transform_1, window_bounds = array<i64: 8, 256>}, {transform_indices = @transform_2, window_bounds = array<i64: 8, 64>}]} {
    %c0 = arith.constant 0 : index
    %c0_0 = arith.constant 0 : index
    %0 = vector.load %arg1[%c0, %c0_0] : memref<256x64xf32, #tpu.memory_space<vmem>>, vector<256x64xf32>
    %c0_1 = arith.constant 0 : index
    %c0_2 = arith.constant 0 : index
    %1 = vector.load %arg2[%c0_1, %c0_2] : memref<8x256xf32, #tpu.memory_space<vmem>>, vector<8x256xf32>
    %c240_i32 = arith.constant 240 : i32
    %2 = tpu.dynamic_rotate %1 by %c240_i32 dim 1 : vector<8x256xf32>, i32 -> vector<8x256xf32>
    %3 = arith.maximumf %1, %2 : vector<8x256xf32>
    %c224_i32 = arith.constant 224 : i32
    %4 = tpu.dynamic_rotate %3 by %c224_i32 dim 1 : vector<8x256xf32>, i32 -> vector<8x256xf32>
    %5 = arith.maximumf %3, %4 : vector<8x256xf32>
    %c192_i32 = arith.constant 192 : i32
    %6 = tpu.dynamic_rotate %5 by %c192_i32 dim 1 : vector<8x256xf32>, i32 -> vector<8x256xf32>
    %7 = arith.maximumf %5, %6 : vector<8x256xf32>
    %c240_i32_3 = arith.constant 240 : i32
    %8 = tpu.dynamic_rotate %7 by %c240_i32_3 dim 1 : vector<8x256xf32>, i32 -> vector<8x256xf32>
    %9 = arith.maximumf %7, %8 : vector<8x256xf32>
    %c255_i32 = arith.constant 255 : i32
    %10 = tpu.dynamic_rotate %9 by %c255_i32 dim 1 : vector<8x256xf32>, i32 -> vector<8x256xf32>
    %11 = arith.maximumf %9, %10 : vector<8x256xf32>
    %c254_i32 = arith.constant 254 : i32
    %12 = tpu.dynamic_rotate %11 by %c254_i32 dim 1 : vector<8x256xf32>, i32 -> vector<8x256xf32>
    %13 = arith.maximumf %11, %12 : vector<8x256xf32>
    %c252_i32 = arith.constant 252 : i32
    %14 = tpu.dynamic_rotate %13 by %c252_i32 dim 1 : vector<8x256xf32>, i32 -> vector<8x256xf32>
    %15 = arith.maximumf %13, %14 : vector<8x256xf32>
    %c255_i32_4 = arith.constant 255 : i32
    %16 = tpu.dynamic_rotate %15 by %c255_i32_4 dim 1 : vector<8x256xf32>, i32 -> vector<8x256xf32>
    %17 = arith.maximumf %15, %16 : vector<8x256xf32>
    %cst = arith.constant dense<0.000000e+00> : vector<8x64xf32>
    %18 = tpu.matmul %17, %0, %cst {dimension_numbers = #tpu.dot_dimension_numbers<[1], [0], [0], [1], [0, 0, 1, 1], [], []>} : vector<8x256xf32>, vector<256x64xf32>, vector<8x64xf32> -> vector<8x64xf32>
    %c0_5 = arith.constant 0 : index
    %c0_6 = arith.constant 0 : index
    %19 = vector.load %arg3[%c0_5, %c0_6] : memref<8x64xf32, #tpu.memory_space<vmem>>, vector<8x64xf32>
    tpu.vector_store %arg3[%c0_5, %c0_6], %18 {strides = array<i32>} : memref<8x64xf32, #tpu.memory_space<vmem>>, vector<8x64xf32>,
    return
  }
  func.func @transform_0(%arg0: i32) -> (i32, i32) {
    %c0_i32 = arith.constant 0 : i32
    %c0_i32_0 = arith.constant 0 : i32
    %c0_i32_1 = arith.constant 0 : i32
    return %c0_i32, %c0_i32_0 : i32, i32
  }
  func.func @transform_1(%arg0: i32) -> (i32, i32) {
    %c0_i32 = arith.constant 0 : i32
    %c0_i32_0 = arith.constant 0 : i32
    return %arg0, %c0_i32 : i32, i32
  }
  func.func @transform_2(%arg0: i32) -> (i32, i32) {
    %c0_i32 = arith.constant 0 : i32
    %c0_i32_0 = arith.constant 0 : i32
    return %arg0, %c0_i32 : i32, i32
  }
}

</mosaic_0001>

<llo_original>
// kernel: tpu_custom_call.1
$region0: #{tpu_custom_call.1}
  #allocation0 [shape = 'u32[]', space=smem, size = 0x4, offset = 0x4, fixed_abs, tag = 'smem constant byte address 0x4 - core index']
  #allocation1 [shape = 'u32[144,128]{1,0:T(1,128)}', space=vmem, size = 0x12000, scoped, tag = 'internal scratch']
  %s0 = inlined_call_operand.vmem [shape: f32[256,64], index: 0, kind: input, shape index: {}]
  %s1 = inlined_call_operand.vmem [shape: f32[8,256], index: 1, kind: input, shape index: {}]
  %s2 = inlined_call_operand.hbm [shape: f32[8,64], index: 2, kind: output, shape index: {}]
  %s3 = sld [smem:[#allocation0]]
  $region18: #{tpu_custom_call.1} parent=0
    _
  %s5 = ssub.s32 1, %s3
  %s6 = scalar_select 0, %s5, %s3
  $region1: #{tpu_custom_call.1} parent=0
    #allocation2 [shape = 'u8[4096]{0}', space=vmem, size = 0x1000, scoped, tag = 'output window, operand 0, single buffered']
    #allocation3 [shape = 's32[1]{0}', space=sflag, size = 0x4, scoped, tag = 'scoped memory for tpu_custom_call.1']
    %7 = vsyncpa [#allocation3], 0
    // Predicated region
    $region2: #{tpu_custom_call.1} parent=1 // pred_check
      _
    $region3: #{tpu_custom_call.1} parent=1 // pred_check_branch
      %9 = sbr.rel (0) target = $region5
    $region4: #{tpu_custom_call.1} parent=1 // pred_region
      _
    $region5: #{tpu_custom_call.1} parent=1 // pred_fallthru
      _
    // Predicated region
    $region6: #{tpu_custom_call.1} parent=1 // pred_check
      _
    $region7: #{tpu_custom_call.1} parent=1 // pred_check_branch
      %11 = sbr.rel (0) target = $region9
    $region8: #{tpu_custom_call.1} parent=1 // pred_region
      _
    $region9: #{tpu_custom_call.1} parent=1 // pred_fallthru
      _
    %v12 = vld [vmem:[%s0] sm:$0xff]
    %v13 = vld [vmem:[%s0 + $0x8] sm:$0xff]
    %v14 = vld [vmem:[%s0 + $0x10] sm:$0xff]
    %v15 = vld [vmem:[%s0 + $0x18] sm:$0xff]
    %v16 = vld [vmem:[%s0 + $0x20] sm:$0xff]
    %v17 = vld [vmem:[%s0 + $0x28] sm:$0xff]
    %v18 = vld [vmem:[%s0 + $0x30] sm:$0xff]
    %v19 = vld [vmem:[%s0 + $0x38] sm:$0xff]
    %v20 = vld [vmem:[%s0 + $0x40] sm:$0xff]
    %v21 = vld [vmem:[%s0 + $0x48] sm:$0xff]
    %v22 = vld [vmem:[%s0 + $0x50] sm:$0xff]
    %v23 = vld [vmem:[%s0 + $0x58] sm:$0xff]
    %v24 = vld [vmem:[%s0 + $0x60] sm:$0xff]
    %v25 = vld [vmem:[%s0 + $0x68] sm:$0xff]
    %v26 = vld [vmem:[%s0 + $0x70] sm:$0xff]
    %v27 = vld [vmem:[%s0 + $0x78] sm:$0xff]
    %v28 = vld [vmem:[%s0 + $0x80] sm:$0xff]
    %v29 = vld [vmem:[%s0 + $0x88] sm:$0xff]
    %v30 = vld [vmem:[%s0 + $0x90] sm:$0xff]
    %v31 = vld [vmem:[%s0 + $0x98] sm:$0xff]
    %v32 = vld [vmem:[%s0 + $0xa0] sm:$0xff]
    %v33 = vld [vmem:[%s0 + $0xa8] sm:$0xff]
    %v34 = vld [vmem:[%s0 + $0xb0] sm:$0xff]
    %v35 = vld [vmem:[%s0 + $0xb8] sm:$0xff]
    %v36 = vld [vmem:[%s0 + $0xc0] sm:$0xff]
    %v37 = vld [vmem:[%s0 + $0xc8] sm:$0xff]
    %v38 = vld [vmem:[%s0 + $0xd0] sm:$0xff]
    %v39 = vld [vmem:[%s0 + $0xd8] sm:$0xff]
    %v40 = vld [vmem:[%s0 + $0xe0] sm:$0xff]
    %v41 = vld [vmem:[%s0 + $0xe8] sm:$0xff]
    %v42 = vld [vmem:[%s0 + $0xf0] sm:$0xff]
    %v43 = vld [vmem:[%s0 + $0xf8] sm:$0xff]
    %v44 = vld [vmem:[%s1] sm:$0xff]
    %v45 = vld [vmem:[%s1 + $0x8] sm:$0xff]
    %46 = vrot.lane.b32.xlu0 %v44, 112
    %v47 = vpop.permute.xlu0 %46
    %48 = vrot.lane.b32.xlu0 %v45, 112
    %v49 = vpop.permute.xlu0 %48
    %v50 = vlaneseq
    %v51 = vand.u32 %v50, 127
    %vm52 = vcmp.lt.s32.totalorder %v51, 112
    %v53 = vsel %vm52, %v47, %v49
    %v54 = vsel %vm52, %v49, %v47
    %v55 = vmax.f32 %v44, %v53
    %v56 = vmax.f32 %v45, %v54
    %57 = vrot.lane.b32.xlu0 %v55, 96
    %v58 = vpop.permute.xlu0 %57
    %59 = vrot.lane.b32.xlu0 %v56, 96
    %v60 = vpop.permute.xlu0 %59
    %vm61 = vcmp.lt.s32.totalorder %v51, 96
    %v62 = vsel %vm61, %v58, %v60
    %v63 = vsel %vm61, %v60, %v58
    %v64 = vmax.f32 %v55, %v62
    %v65 = vmax.f32 %v56, %v63
    %66 = vrot.lane.b32.xlu0 %v64, 64
    %v67 = vpop.permute.xlu0 %66
    %68 = vrot.lane.b32.xlu0 %v65, 64
    %v69 = vpop.permute.xlu0 %68
    %vm70 = vcmp.lt.s32.totalorder %v51, 64
    %v71 = vsel %vm70, %v67, %v69
    %v72 = vsel %vm70, %v69, %v67
    %v73 = vmax.f32 %v64, %v71
    %v74 = vmax.f32 %v65, %v72
    %75 = vrot.lane.b32.xlu0 %v73, 112
    %v76 = vpop.permute.xlu0 %75
    %77 = vrot.lane.b32.xlu0 %v74, 112
    %v78 = vpop.permute.xlu0 %77
    %v79 = vsel %vm52, %v76, %v78
    %v80 = vsel %vm52, %v78, %v76
    %v81 = vmax.f32 %v73, %v79
    %v82 = vmax.f32 %v74, %v80
    %83 = vrot.lane.b32.xlu0 %v81, 127
    %v84 = vpop.permute.xlu0 %83
    %85 = vrot.lane.b32.xlu0 %v82, 127
    %v86 = vpop.permute.xlu0 %85
    %vm87 = vcmp.lt.s32.totalorder %v51, 127
    %v88 = vsel %vm87, %v84, %v86
    %v89 = vsel %vm87, %v86, %v84
    %v90 = vmax.f32 %v81, %v88
    %v91 = vmax.f32 %v82, %v89
    %92 = vrot.lane.b32.xlu0 %v90, 126
    %v93 = vpop.permute.xlu0 %92
    %94 = vrot.lane.b32.xlu0 %v91, 126
    %v95 = vpop.permute.xlu0 %94
    %vm96 = vcmp.lt.s32.totalorder %v51, 126
    %v97 = vsel %vm96, %v93, %v95
    %v98 = vsel %vm96, %v95, %v93
    %v99 = vmax.f32 %v90, %v97
    %v100 = vmax.f32 %v91, %v98
    %101 = vrot.lane.b32.xlu0 %v99, 124
    %v102 = vpop.permute.xlu0 %101
    %103 = vrot.lane.b32.xlu0 %v100, 124
    %v104 = vpop.permute.xlu0 %103
    %vm105 = vcmp.lt.s32.totalorder %v51, 124
    %v106 = vsel %vm105, %v102, %v104
    %v107 = vsel %vm105, %v104, %v102
    %v108 = vmax.f32 %v99, %v106
    %v109 = vmax.f32 %v100, %v107
    %110 = vrot.lane.b32.xlu0 %v108, 127
    %v111 = vpop.permute.xlu0 %110
    %112 = vrot.lane.b32.xlu0 %v109, 127
    %v113 = vpop.permute.xlu0 %112
    %v114 = vsel %vm87, %v111, %v113
    %v115 = vsel %vm87, %v113, %v111
    %v116 = vmax.f32 %v108, %v114
    %v117 = vmax.f32 %v109, %v115
    %118 = vmatprep.subr.mxu0 0.0
    %119 = vmatpush1.msra.mxu0 %v12
    %120 = vmatprep.subr.mxu0 0.0
    %121 = vmatpush1.msra.mxu0 %v13
    %122 = vmatprep.subr.mxu0 0.0
    %123 = vmatpush1.msra.mxu0 %v14
    %124 = vmatprep.subr.mxu0 0.0
    %125 = vmatpush1.msra.mxu0 %v15
    %126 = vmatprep.subr.mxu0 0.0
    %127 = vmatpush1.msra.mxu0 %v16
    %128 = vmatprep.subr.mxu0 0.0
    %129 = vmatpush1.msra.mxu0 %v17
    %130 = vmatprep.subr.mxu0 0.0
    %131 = vmatpush1.msra.mxu0 %v18
    %132 = vmatprep.subr.mxu0 0.0
    %133 = vmatpush1.msra.mxu0 %v19
    %134 = vmatprep.subr.mxu0 0.0
    %135 = vmatpush1.msra.mxu0 %v20
    %136 = vmatprep.subr.mxu0 0.0
    %137 = vmatpush1.msra.mxu0 %v21
    %138 = vmatprep.subr.mxu0 0.0
    %139 = vmatpush1.msra.mxu0 %v22
    %140 = vmatprep.subr.mxu0 0.0
    %141 = vmatpush1.msra.mxu0 %v23
    %142 = vmatprep.subr.mxu0 0.0
    %143 = vmatpush1.msra.mxu0 %v24
    %144 = vmatprep.subr.mxu0 0.0
    %145 = vmatpush1.msra.mxu0 %v25
    %146 = vmatprep.subr.mxu0 0.0
    %147 = vmatpush1.msra.mxu0 %v26
    %148 = vmatprep.subr.mxu0 0.0
    %149 = vmatpush1.msra.mxu0 %v27
    %150 = vmatprep.subr.mxu0 0.0
    %151 = vmatpush1.msra.mxu0 %v28
    %152 = vmatprep.subr.mxu0 0.0
    %153 = vmatpush1.msra.mxu0 %v29
    %154 = vmatprep.subr.mxu0 0.0
    %155 = vmatpush1.msra.mxu0 %v30
    %156 = vmatprep.subr.mxu0 0.0
    %157 = vmatpush1.msra.mxu0 %v31
    %158 = vmatprep.subr.mxu0 0.0
    %159 = vmatpush1.msra.mxu0 %v32
    %160 = vmatprep.subr.mxu0 0.0
    %161 = vmatpush1.msra.mxu0 %v33
    %162 = vmatprep.subr.mxu0 0.0
    %163 = vmatpush1.msra.mxu0 %v34
    %164 = vmatprep.subr.mxu0 0.0
    %165 = vmatpush1.msra.mxu0 %v35
    %166 = vmatprep.subr.mxu0 0.0
    %167 = vmatpush1.msra.mxu0 %v36
    %168 = vmatprep.subr.mxu0 0.0
    %169 = vmatpush1.msra.mxu0 %v37
    %170 = vmatprep.subr.mxu0 0.0
    %171 = vmatpush1.msra.mxu0 %v38
    %172 = vmatprep.subr.mxu0 0.0
    %173 = vmatpush1.msra.mxu0 %v39
    %174 = vmatprep.subr.mxu0 0.0
    %175 = vmatpush1.msra.mxu0 %v40
    %176 = vmatprep.subr.mxu0 0.0
    %177 = vmatpush1.msra.mxu0 %v41
    %178 = vmatprep.subr.mxu0 0.0
    %179 = vmatpush1.msra.mxu0 %v42
    %180 = vmatprep.subr.mxu0 0.0
    %181 = vmatpush1.msra.mxu0 %v43
    %182 = vmatprep.mubr.f32.mxu0 %v117
    %183 = vmatmul.mubr.f32.gmra.mrb[0].mxu0 %v116
    %v184 = vpop.f32.mrb[0].mxu0
    %v185 = vadd.f32 0.0, %v184
    %v186 = vpop.f32.mrb[0].mxu0
    %187 = vdwg.mxu0
    %vm188 = vcmask 523264
    %189 = vst.msk [vmem:[#allocation2] sm:$0xff] %vm188, %v185
    // Predicated region
    $region10: #{tpu_custom_call.1} parent=1 // pred_check
      _
    $region11: #{tpu_custom_call.1} parent=1 // pred_check_branch
      %191 = sbr.rel (0) target = $region13
    $region12: #{tpu_custom_call.1} parent=1 // pred_region
      %s193 = ssub.s32 128, 128
      %194 = vsyncadd [#allocation3], %s193
      %s196 = sshll.u32 [#allocation2], 4
      %s197 = int_to_ptr.vmem [resolvable:$true] %s196
      %199 = dma.vmem_to_hbm [thread:$0]  %s197, 128, %s2, [#allocation3]
    $region13: #{tpu_custom_call.1} parent=1 // pred_fallthru
      _
    // Predicated region
    $region14: #{tpu_custom_call.1} parent=1 // pred_check
      _
    $region15: #{tpu_custom_call.1} parent=1 // pred_check_branch
      %201 = sbr.rel (0) target = $region17
    $region16: #{tpu_custom_call.1} parent=1 // pred_region
      %202 = dma.done [#allocation3], 128
    $region17: #{tpu_custom_call.1} parent=1 // pred_fallthru
      _
    %203 = vsyncpa [#allocation3], 1

</llo_original>
